<compile_context>
chip_gen: v5e
topology: v5e:2x2
jax: 0.10.0
libtpu: 0.0.40
codegen_flags: <defaults>
</compile_context>

<pallas_src>
import functools

import jax
import jax.numpy as jnp
from jax import lax
from jax.experimental import pallas as pl
from jax.experimental.pallas import tpu as pltpu


def _round_up(x, m):
    return (x + m - 1) // m * m


def _conv_encoder_kernel(x_ref, w_ref, b_ref, o_ref, h_ref, *,
                         seq_len, tile_l, halo, kernel_size, num_convs,
                         matmul_dtype, weights_resident):
    """One (batch, seq-tile, layer) grid step.

    x_ref: (1, 1, W, Cp)      input window (tile + halo each side), f32
    w_ref: (num_convs|1, K, Cp, Cp)  weights (C_in, C_out), bf16
                              (all layers if resident, else this layer's block)
    b_ref: (1, 1, Cp)         this layer's bias, f32
    o_ref: (1, 1, tile_l, Cp) output tile (central rows of the window)
    h_ref: (W, Cp)            f32 VMEM scratch carrying activations across layers
    """
    layer = pl.program_id(2)
    pad = kernel_size // 2
    W, Cp = h_ref.shape

    @pl.when(layer == 0)
    def _():
        h_ref[...] = x_ref[0, 0].astype(jnp.float32)

    h = h_ref[...]                                   # (W, Cp) f32
    hb = h.astype(matmul_dtype)                      # bf16 operands for the MXU
    row = lax.broadcasted_iota(jnp.int32, (W, 1), 0)

    # 'same' Conv1d over the sequence axis: per tap, matmul the unshifted
    # activations, then shift the RESULT with an XLU roll and zero the rows
    # that wrapped around the window edge.
    acc = jnp.zeros((W, Cp), jnp.float32)
    for t in range(kernel_size):
        # Dynamic leading-dim index when all layers' weights are VMEM-resident.
        w_t = w_ref[layer, t] if weights_resident else w_ref[0, t]
        y = jnp.dot(hb, w_t, preferred_element_type=jnp.float32)
        s = pad - t                                  # static shift for tap t
        if s == 0:
            acc = acc + y
        elif s > 0:
            y = pltpu.roll(y, shift=s, axis=0)
            acc = acc + jnp.where(row >= s, y, 0.0)
        else:
            y = pltpu.roll(y, shift=W + s, axis=0)
            acc = acc + jnp.where(row < W + s, y, 0.0)

    # ResidualConv + ReLU; bias folded into the residual add (all f32).
    # TODO(synk): training-mode dropout (stochastic) intentionally omitted.
    h_new = jnp.maximum(h + acc + b_ref[0], 0.0)

    # Window rows that lie outside the real sequence must stay zero so the
    # next layer sees Conv1d's per-layer zero padding.  (This is NOT the
    # non-pad mask, which PyTorch applies to the input only.)
    tile = pl.program_id(1)
    gpos = tile * tile_l - halo + row
    h_new = jnp.where((gpos >= 0) & (gpos < seq_len), h_new, 0.0)
    h_ref[...] = h_new

    @pl.when(layer == num_convs - 1)
    def _():
        o_ref[0, 0] = h_new[halo:halo + tile_l, :].astype(o_ref.dtype)


def conv_encoder(x, non_pad_mask, weights, biases, *, kernel_size,
                 tile_l=512, matmul_dtype=jnp.bfloat16,
                 weight_vmem_budget=12 << 20):
    """x: (B, L, C) f32; non_pad_mask: (B, L) or None;
    weights: (num_convs, K, C, C) stored as (K, C_in, C_out) per layer;
    biases: (num_convs, C)."""
    B, L, C = x.shape
    num_convs, K, Cin, Cout = weights.shape
    assert kernel_size % 2 == 1 and K == kernel_size
    assert Cin == C and Cout == C and biases.shape == (num_convs, C)
    pad = kernel_size // 2

    # ---- static tiling decisions ------------------------------------------
    Cp = _round_up(C, 128)                       # lane-dense channels
    tile_l = _round_up(min(tile_l, _round_up(L, 8)), 8)
    n_tiles = pl.cdiv(L, tile_l)
    Lp = n_tiles * tile_l
    halo = _round_up(num_convs * pad, 8)         # receptive-field halo, 8-aligned
    W = tile_l + 2 * halo

    # ---- shape plumbing: mask, channel pad, L pad, overlapping windows ----
    xm = x.astype(jnp.float32)
    if non_pad_mask is not None:
        xm = xm * non_pad_mask[..., None].astype(jnp.float32)
    xm = jnp.pad(xm, ((0, 0), (halo, halo + Lp - L), (0, Cp - C)))
    win_idx = jnp.arange(n_tiles)[:, None] * tile_l + jnp.arange(W)[None, :]
    xw = xm[:, win_idx, :]                                   # (B, n_tiles, W, Cp)

    wp = jnp.pad(weights, ((0, 0), (0, 0), (0, Cp - C), (0, Cp - C)))
    wp = wp.astype(matmul_dtype)                             # bf16 MXU operands
    bp = jnp.pad(biases, ((0, 0), (0, Cp - C))).astype(jnp.float32)
    bp = bp.reshape(num_convs, 1, Cp)

    # ---- weight residency: fetch the whole stack once if it fits ----------
    w_item = jnp.dtype(matmul_dtype).itemsize
    full_w_bytes = num_convs * K * Cp * Cp * w_item
    weights_resident = (2 * full_w_bytes) <= weight_vmem_budget
    if weights_resident:
        # Constant block index -> DMAed once for the whole grid; the kernel
        # selects the layer with a dynamic leading-dim index.
        w_spec = pl.BlockSpec((num_convs, K, Cp, Cp), lambda b, t, l: (0, 0, 0, 0))
        w_vmem = 2 * full_w_bytes
    else:
        # Fallback: pipeline one layer's weights per grid step.
        w_spec = pl.BlockSpec((1, K, Cp, Cp), lambda b, t, l: (l, 0, 0, 0))
        w_vmem = 2 * K * Cp * Cp * w_item

    # ---- explicit VMEM budget (double-buffered blocks + scratch) ----------
    need = (2 * W * Cp * 4                      # input window (f32)
            + 2 * tile_l * Cp * x.dtype.itemsize  # output tile
            + w_vmem                            # weights (resident or per-layer)
            + 2 * Cp * 4                        # bias
            + W * Cp * 4)                       # h scratch
    # NOTE: keep tile_l * Cp small enough that this stays < ~56 MiB on v7x.
    vmem_limit = min(max(2 * need + (8 << 20), 32 << 20), 100 << 20)

    kernel = functools.partial(
        _conv_encoder_kernel, seq_len=L, tile_l=tile_l, halo=halo,
        kernel_size=kernel_size, num_convs=num_convs,
        matmul_dtype=matmul_dtype, weights_resident=weights_resident)

    out = pl.pallas_call(
        kernel,
        out_shape=jax.ShapeDtypeStruct((B, n_tiles, tile_l, Cp), x.dtype),
        grid=(B, n_tiles, num_convs),
        in_specs=[
            pl.BlockSpec((1, 1, W, Cp), lambda b, t, l: (b, t, 0, 0)),
            w_spec,
            pl.BlockSpec((1, 1, Cp), lambda b, t, l: (l, 0, 0)),
        ],
        out_specs=pl.BlockSpec((1, 1, tile_l, Cp), lambda b, t, l: (b, t, 0, 0)),
        scratch_shapes=[pltpu.VMEM((W, Cp), jnp.float32)],
        compiler_params=pltpu.CompilerParams(
            dimension_semantics=("parallel", "parallel", "arbitrary"),
            vmem_limit_bytes=vmem_limit),
    )(xw, wp, bp)

    return out.reshape(B, Lp, Cp)[:, :L, :C]


def conv_encoder_ref(x, non_pad_mask, weights, biases, *, kernel_size,
                     matmul_dtype=jnp.bfloat16):
    """Pure-JAX reference with the same numerics (bf16 matmul, f32 accum)."""
    pad = kernel_size // 2
    num_convs = weights.shape[0]
    L = x.shape[1]
    h = x.astype(jnp.float32)
    if non_pad_mask is not None:
        h = h * non_pad_mask[..., None].astype(jnp.float32)
    for layer in range(num_convs):
        hp = jnp.pad(h, ((0, 0), (pad, pad), (0, 0)))
        acc = jnp.zeros_like(h)
        for t in range(kernel_size):
            acc = acc + jnp.einsum(
                'blc,cd->bld',
                hp[:, t:t + L, :].astype(matmul_dtype),
                weights[layer, t].astype(matmul_dtype),
                preferred_element_type=jnp.float32)
        h = jnp.maximum(h + acc + biases[layer][None, None, :], 0.0)
    return h.astype(x.dtype)


if __name__ == "__main__":
    key = jax.random.PRNGKey(0)

    # Config 1: exercises L tiling (2 tiles), channel padding 32 -> 128,
    # weights-resident path.
    B, L, HIDDEN, K, NUM_CONVS = 2, 16, 32, 3, 2
    k1, k2, k3, k4 = jax.random.split(key, 4)
    x = jax.random.normal(k1, (B, L, HIDDEN), dtype=jnp.float32)
    mask = jnp.ones((B, L), dtype=jnp.float32).at[1, -3:].set(0.0)
    w = 0.1 * jax.random.normal(k3, (NUM_CONVS, K, HIDDEN, HIDDEN), jnp.float32)
    b = 0.1 * jax.random.normal(k4, (NUM_CONVS, HIDDEN), jnp.float32)

    out = conv_encoder(x, mask, w, b, kernel_size=K, tile_l=8)
    out = jax.block_until_ready(out)
    ref = conv_encoder_ref(x, mask, w, b, kernel_size=K)
    assert out.shape == (B, L, HIDDEN)
    assert jnp.allclose(out, ref, atol=1e-3, rtol=1e-3), \
        float(jnp.max(jnp.abs(out - ref)))

    # Config 2: wider kernel, deeper stack, odd L and channels.
    B2, L2, H2, K2, NC2 = 1, 11, 40, 5, 3
    j1, j2, j3, j4 = jax.random.split(jax.random.PRNGKey(1), 4)
    x2 = jax.random.normal(j1, (B2, L2, H2), dtype=jnp.float32)
    mask2 = jnp.ones((B2, L2), dtype=jnp.float32).at[0, -2:].set(0.0)
    w2 = 0.1 * jax.random.normal(j3, (NC2, K2, H2, H2), jnp.float32)
    b2 = 0.1 * jax.random.normal(j4, (NC2, H2), jnp.float32)

    out2 = jax.block_until_ready(
        conv_encoder(x2, mask2, w2, b2, kernel_size=K2, tile_l=8))
    ref2 = conv_encoder_ref(x2, mask2, w2, b2, kernel_size=K2)
    assert out2.shape == (B2, L2, H2)
    assert jnp.allclose(out2, ref2, atol=1e-3, rtol=1e-3), \
        float(jnp.max(jnp.abs(out2 - ref2)))

    # Config 3: same as config 2 but force the per-layer (non-resident) weight
    # path so both code paths are compiled and verified.
    out3 = jax.block_until_ready(
        conv_encoder(x2, mask2, w2, b2, kernel_size=K2, tile_l=8,
                     weight_vmem_budget=0))
    assert jnp.allclose(out3, ref2, atol=1e-3, rtol=1e-3), \
        float(jnp.max(jnp.abs(out3 - ref2)))

    print("KERNEL_OK")
</pallas_src>

<mosaic_0001>
module attributes {stable_mosaic.version = 11 : i64} {
  func.func @_conv_encoder_kernel(%arg0: i32, %arg1: i32, %arg2: i32, %arg3: memref<1x1x24x128xf32, #tpu.memory_space<vmem>>, %arg4: memref<2x3x128x128xbf16, #tpu.memory_space<vmem>>, %arg5: memref<1x1x128xf32, #tpu.memory_space<vmem>>, %arg6: memref<1x1x8x128xf32, #tpu.memory_space<vmem>>, %arg7: memref<24x128xf32, #tpu.memory_space<vmem>>) attributes {dimension_semantics = [#tpu.dimension_semantics<parallel>, #tpu.dimension_semantics<parallel>, #tpu.dimension_semantics<arbitrary>], iteration_bounds = array<i64: 2, 2, 2>, scalar_prefetch = 0 : i64, scratch_operands = 1 : i64, tpu.core_type = #tpu.core_type<tc>, window_params = [{transform_indices = @transform_0, window_bounds = array<i64: 1, 1, 24, 128>}, {pipeline_mode = #tpu.pipeline_mode<synchronous>, transform_indices = @transform_1, window_bounds = array<i64: 2, 3, 128, 128>}, {transform_indices = @transform_2, window_bounds = array<i64: 1, 1, 128>}, {transform_indices = @transform_3, window_bounds = array<i64: 1, 1, 8, 128>}]} {
    %c0_i32 = arith.constant 0 : i32
    %0 = arith.cmpi eq, %arg2, %c0_i32 : i32
    %1 = arith.extui %0 : i1 to i32
    %c0_i32_0 = arith.constant 0 : i32
    %2 = arith.cmpi ne, %1, %c0_i32_0 : i32
    scf.if %2 {
      %c0_27 = arith.constant 0 : index
      %c0_28 = arith.constant 0 : index
      %c0_29 = arith.constant 0 : index
      %c0_30 = arith.constant 0 : index
      %60 = vector.load %arg3[%c0_27, %c0_28, %c0_29, %c0_30] : memref<1x1x24x128xf32, #tpu.memory_space<vmem>>, vector<1x1x24x128xf32>
      %61 = vector.shape_cast %60 : vector<1x1x24x128xf32> to vector<24x128xf32>
      %c0_31 = arith.constant 0 : index
      %c0_32 = arith.constant 0 : index
      %62 = vector.load %arg7[%c0_31, %c0_32] : memref<24x128xf32, #tpu.memory_space<vmem>>, vector<24x128xf32>
      tpu.vector_store %arg7[%c0_31, %c0_32], %61 {strides = array<i32>} : memref<24x128xf32, #tpu.memory_space<vmem>>, vector<24x128xf32>,
    } else {
    }
    %c0 = arith.constant 0 : index
    %c0_1 = arith.constant 0 : index
    %3 = vector.load %arg7[%c0, %c0_1] : memref<24x128xf32, #tpu.memory_space<vmem>>, vector<24x128xf32>
    %4 = arith.truncf %3 : vector<24x128xf32> to vector<24x128xbf16>
    %5 = tpu.iota {dimensions = array<i32: 0>} : vector<24x1xi32>
    %cst = arith.constant 0.000000e+00 : f32
    %6 = vector.broadcast %cst : f32 to vector<24x128xf32>
    %7 = arith.index_cast %arg2 : i32 to index
    %c0_2 = arith.constant 0 : index
    %c0_3 = arith.constant 0 : index
    %c0_4 = arith.constant 0 : index
    %8 = vector.load %arg4[%7, %c0_2, %c0_3, %c0_4] : memref<2x3x128x128xbf16, #tpu.memory_space<vmem>>, vector<1x1x128x128xbf16>
    %9 = vector.shape_cast %8 : vector<1x1x128x128xbf16> to vector<128x128xbf16>
    %cst_5 = arith.constant dense<0.000000e+00> : vector<24x128xf32>
    %10 = tpu.matmul %4, %9, %cst_5 {dimension_numbers = #tpu.dot_dimension_numbers<[1], [0], [0], [1], [0, 0, 1, 1], [], []>} : vector<24x128xbf16>, vector<128x128xbf16>, vector<24x128xf32> -> vector<24x128xf32>
    %c1_i32 = arith.constant 1 : i32
    %11 = tpu.dynamic_rotate %10 by %c1_i32 dim 0 : vector<24x128xf32>, i32 -> vector<24x128xf32>
    %c1_i32_6 = arith.constant 1 : i32
    %12 = vector.broadcast %c1_i32_6 : i32 to vector<24x1xi32>
    %13 = arith.cmpi sge, %5, %12 : vector<24x1xi32>
    %cst_7 = arith.constant 0.000000e+00 : f32
    %14 = vector.shape_cast %13 : vector<24x1xi1> to vector<24x1xi1>
    %15 = vector.broadcast %14 : vector<24x1xi1> to vector<24x128xi1>
    %16 = vector.broadcast %cst_7 : f32 to vector<24x128xf32>
    %17 = arith.select %15, %11, %16 : vector<24x128xi1>, vector<24x128xf32>
    %18 = arith.addf %6, %17 : vector<24x128xf32>
    %19 = arith.index_cast %arg2 : i32 to index
    %c1 = arith.constant 1 : index
    %c0_8 = arith.constant 0 : index
    %c0_9 = arith.constant 0 : index
    %20 = vector.load %arg4[%19, %c1, %c0_8, %c0_9] : memref<2x3x128x128xbf16, #tpu.memory_space<vmem>>, vector<1x1x128x128xbf16>
    %21 = vector.shape_cast %20 : vector<1x1x128x128xbf16> to vector<128x128xbf16>
    %cst_10 = arith.constant dense<0.000000e+00> : vector<24x128xf32>
    %22 = tpu.matmul %4, %21, %cst_10 {dimension_numbers = #tpu.dot_dimension_numbers<[1], [0], [0], [1], [0, 0, 1, 1], [], []>} : vector<24x128xbf16>, vector<128x128xbf16>, vector<24x128xf32> -> vector<24x128xf32>
    %23 = arith.addf %18, %22 : vector<24x128xf32>
    %24 = arith.index_cast %arg2 : i32 to index
    %c2 = arith.constant 2 : index
    %c0_11 = arith.constant 0 : index
    %c0_12 = arith.constant 0 : index
    %25 = vector.load %arg4[%24, %c2, %c0_11, %c0_12] : memref<2x3x128x128xbf16, #tpu.memory_space<vmem>>, vector<1x1x128x128xbf16>
    %26 = vector.shape_cast %25 : vector<1x1x128x128xbf16> to vector<128x128xbf16>
    %cst_13 = arith.constant dense<0.000000e+00> : vector<24x128xf32>
    %27 = tpu.matmul %4, %26, %cst_13 {dimension_numbers = #tpu.dot_dimension_numbers<[1], [0], [0], [1], [0, 0, 1, 1], [], []>} : vector<24x128xbf16>, vector<128x128xbf16>, vector<24x128xf32> -> vector<24x128xf32>
    %c23_i32 = arith.constant 23 : i32
    %28 = tpu.dynamic_rotate %27 by %c23_i32 dim 0 : vector<24x128xf32>, i32 -> vector<24x128xf32>
    %c23_i32_14 = arith.constant 23 : i32
    %29 = vector.broadcast %c23_i32_14 : i32 to vector<24x1xi32>
    %30 = arith.cmpi slt, %5, %29 : vector<24x1xi32>
    %cst_15 = arith.constant 0.000000e+00 : f32
    %31 = vector.shape_cast %30 : vector<24x1xi1> to vector<24x1xi1>
    %32 = vector.broadcast %31 : vector<24x1xi1> to vector<24x128xi1>
    %33 = vector.broadcast %cst_15 : f32 to vector<24x128xf32>
    %34 = arith.select %32, %28, %33 : vector<24x128xi1>, vector<24x128xf32>
    %35 = arith.addf %23, %34 : vector<24x128xf32>
    %36 = arith.addf %3, %35 : vector<24x128xf32>
    %c0_16 = arith.constant 0 : index
    %c0_17 = arith.constant 0 : index
    %c0_18 = arith.constant 0 : index
    %37 = vector.load %arg5[%c0_16, %c0_17, %c0_18] : memref<1x1x128xf32, #tpu.memory_space<vmem>>, vector<1x1x128xf32>
    %38 = vector.shape_cast %37 : vector<1x1x128xf32> to vector<1x128xf32>
    %39 = vector.broadcast %38 : vector<1x128xf32> to vector<24x128xf32>
    %40 = arith.addf %36, %39 : vector<24x128xf32>
    %cst_19 = arith.constant 0.000000e+00 : f32
    %41 = vector.broadcast %cst_19 : f32 to vector<24x128xf32>
    %42 = arith.maximumf %40, %41 : vector<24x128xf32>
    %c8_i32 = arith.constant 8 : i32
    %43 = arith.muli %arg1, %c8_i32 : i32
    %c8_i32_20 = arith.constant 8 : i32
    %44 = arith.subi %43, %c8_i32_20 : i32
    %45 = vector.broadcast %44 : i32 to vector<24x1xi32>
    %46 = arith.addi %45, %5 : vector<24x1xi32>
    %c0_i32_21 = arith.constant 0 : i32
    %47 = vector.broadcast %c0_i32_21 : i32 to vector<24x1xi32>
    %48 = arith.cmpi sge, %46, %47 : vector<24x1xi32>
    %c16_i32 = arith.constant 16 : i32
    %49 = vector.broadcast %c16_i32 : i32 to vector<24x1xi32>
    %50 = arith.cmpi slt, %46, %49 : vector<24x1xi32>
    %51 = arith.andi %48, %50 : vector<24x1xi1>
    %cst_22 = arith.constant 0.000000e+00 : f32
    %52 = vector.shape_cast %51 : vector<24x1xi1> to vector<24x1xi1>
    %53 = vector.broadcast %52 : vector<24x1xi1> to vector<24x128xi1>
    %54 = vector.broadcast %cst_22 : f32 to vector<24x128xf32>
    %55 = arith.select %53, %42, %54 : vector<24x128xi1>, vector<24x128xf32>
    %c0_23 = arith.constant 0 : index
    %c0_24 = arith.constant 0 : index
    %56 = vector.load %arg7[%c0_23, %c0_24] : memref<24x128xf32, #tpu.memory_space<vmem>>, vector<24x128xf32>
    tpu.vector_store %arg7[%c0_23, %c0_24], %55 {strides = array<i32>} : memref<24x128xf32, #tpu.memory_space<vmem>>, vector<24x128xf32>,
    %c1_i32_25 = arith.constant 1 : i32
    %57 = arith.cmpi eq, %arg2, %c1_i32_25 : i32
    %58 = arith.extui %57 : i1 to i32
    %c0_i32_26 = arith.constant 0 : i32
    %59 = arith.cmpi ne, %58, %c0_i32_26 : i32
    scf.if %59 {
      %60 = vector.extract_strided_slice %55 {offsets = [8, 0], sizes = [8, 128], strides = [1, 1]} : vector<24x128xf32> to vector<8x128xf32>
      %c0_27 = arith.constant 0 : index
      %c0_28 = arith.constant 0 : index
      %c0_29 = arith.constant 0 : index
      %c0_30 = arith.constant 0 : index
      %61 = vector.load %arg6[%c0_27, %c0_28, %c0_29, %c0_30] : memref<1x1x8x128xf32, #tpu.memory_space<vmem>>, vector<1x1x8x128xf32>
      %62 = vector.shape_cast %61 : vector<1x1x8x128xf32> to vector<8x128xf32>
      %63 = vector.shape_cast %60 : vector<8x128xf32> to vector<1x1x8x128xf32>
      tpu.vector_store %arg6[%c0_27, %c0_28, %c0_29, %c0_30], %63 {strides = array<i32>} : memref<1x1x8x128xf32, #tpu.memory_space<vmem>>, vector<1x1x8x128xf32>,
    } else {
    }
    return
  }
  func.func @transform_0(%arg0: i32, %arg1: i32, %arg2: i32) -> (i32, i32, i32, i32) {
    %c0_i32 = arith.constant 0 : i32
    %c0_i32_0 = arith.constant 0 : i32
    %c0_i32_1 = arith.constant 0 : i32
    return %arg0, %arg1, %c0_i32, %c0_i32_0 : i32, i32, i32, i32
  }
  func.func @transform_1(%arg0: i32, %arg1: i32, %arg2: i32) -> (i32, i32, i32, i32) {
    %c0_i32 = arith.constant 0 : i32
    %c0_i32_0 = arith.constant 0 : i32
    %c0_i32_1 = arith.constant 0 : i32
    %c0_i32_2 = arith.constant 0 : i32
    %c0_i32_3 = arith.constant 0 : i32
    return %c0_i32, %c0_i32_0, %c0_i32_1, %c0_i32_2 : i32, i32, i32, i32
  }
  func.func @transform_2(%arg0: i32, %arg1: i32, %arg2: i32) -> (i32, i32, i32) {
    %c0_i32 = arith.constant 0 : i32
    %c0_i32_0 = arith.constant 0 : i32
    %c0_i32_1 = arith.constant 0 : i32
    return %arg2, %c0_i32, %c0_i32_0 : i32, i32, i32
  }
  func.func @transform_3(%arg0: i32, %arg1: i32, %arg2: i32) -> (i32, i32, i32, i32) {
    %c0_i32 = arith.constant 0 : i32
    %c0_i32_0 = arith.constant 0 : i32
    %c0_i32_1 = arith.constant 0 : i32
    return %arg0, %arg1, %c0_i32, %c0_i32_0 : i32, i32, i32, i32
  }
}

</mosaic_0001>

<llo_original>
// kernel: tpu_custom_call.1
$region0: #{tpu_custom_call.1}
  #allocation0 [shape = 'u32[]', space=smem, size = 0x4, offset = 0x4, fixed_abs, tag = 'smem constant byte address 0x4 - core index']
  #allocation1 [shape = 'u32[72,128]{1,0:T(1,128)}', space=vmem, size = 0x9000, scoped, tag = 'internal scratch']
  #allocation2 [shape = 'f32[24,128]{1,0:T(8,128)}', space=vmem, size = 0x3000, scoped, tag = 'scratch operand']
  %s0 = inlined_call_operand.hbm [shape: f32[2,2,24,128], index: 0, kind: input, shape index: {}]
  %s1 = inlined_call_operand.hbm [shape: bf16[2,3,128,128], index: 1, kind: input, shape index: {}]
  %s2 = inlined_call_operand.hbm [shape: f32[2,1,128], index: 2, kind: input, shape index: {}]
  %s3 = inlined_call_operand.hbm [shape: f32[2,2,8,128], index: 3, kind: output, shape index: {}]
  %s4 = sld [smem:[#allocation0]]
  $region65: #{tpu_custom_call.1} parent=0
    _
  %s6 = ssub.s32 1, %s4
  %s7 = scalar_select 0, %s6, %s4
  $region1: #{tpu_custom_call.1} parent=0
    #allocation3 [shape = 'u8[24576]{0}', space=vmem, size = 0x6000, scoped, tag = 'input window, operand 0']
    #allocation4 [shape = 's32[2]{0}', space=sflag, size = 0x8, scoped, tag = 'scoped memory for tpu_custom_call.1']
    #allocation5 [shape = 's32[2]{0}', space=sflag, size = 0x8, scoped, tag = 'scoped memory for tpu_custom_call.1']
    #allocation6 [shape = 'u8[196608]{0}', space=vmem, size = 0x30000, scoped, tag = 'input window, operand 1, single buffered']
    #allocation7 [shape = 's32[1]{0}', space=sflag, size = 0x4, scoped, tag = 'scoped memory for tpu_custom_call.1']
    #allocation8 [shape = 'u8[1024]{0}', space=vmem, size = 0x400, scoped, tag = 'input window, operand 2']
    #allocation9 [shape = 'u8[8192]{0}', space=vmem, size = 0x2000, scoped, tag = 'output window, operand 0']
    %8 = vsyncpa [#allocation4], 0
    %s9 = scalar_lea.sflag [#allocation4], 1
    %10 = vsyncpa %s9, 0
    %11 = vsyncpa [#allocation7], 0
    %12 = vsyncpa [#allocation5], 0
    %s13 = scalar_lea.sflag [#allocation5], 1
    %14 = vsyncpa %s13, 0
    loop: start=0, step=1, limit=10
    $region2: #{tpu_custom_call.1} parent=1 // loop_pre_header
      _
    $region3: #{tpu_custom_call.1} parent=1 // loop_header
      %s16 = sphi 0, %s20
      %p17 = scmp.ge.s32.totalorder %s16, 10
      %s23 = sphi 0, %s42
      %s24 = sphi 0, %s38
      %s25 = sphi 0, %s34
      %s26 = sphi 0, %s23
      %s27 = sphi 0, %s24
      %s28 = sphi 0, %s25
      %s29 = sphi 0, %s26
      %s30 = sphi 0, %s27
      %s31 = sphi 0, %s28
      %s47 = sphi 0, %s49
      %s50 = sphi 0, %s47
      %s51 = sphi 0, %s50
      %s67 = sphi 0, %s51
      %s71 = sphi 0, %s71
      %s73 = sphi 0, %s71
      %s74 = sphi 0, %s73
      %s88 = sphi 0, %s74
      %s94 = sphi 0, %s96
      %s97 = sphi 0, %s94
      %s98 = sphi 0, %s97
      %s114 = sphi 0, %s98
      %s122 = sphi 0, %s124
      %s125 = sphi 0, %s122
      %s126 = sphi 0, %s125
      %s142 = sphi 0, %s126
    $region4: #{tpu_custom_call.1} parent=1 // loop_header_branch
      %19 = sbr.rel (%p17) target = $region8
    $region5: #{tpu_custom_call.1} parent=1 // loop_body
      %s21 = ssub.s32 %s16, 1
      %s22 = ssub.s32 %s16, 2
      %s32 = sadd.s32 1, %s25
      %p33 = scmp.ge.s32.totalorder %s32, 2
      %s34 = scalar_select %p33, 0, %s32
      %s35 = sadd.s32 1, %s24
      %s36 = scalar_select %p33, %s35, %s24
      %p37 = scmp.ge.s32.totalorder %s36, 2
      %s38 = scalar_select %p37, 0, %s36
      %s39 = sadd.s32 1, %s23
      %s40 = scalar_select %p37, %s39, %s23
      %p41 = scmp.ge.s32.totalorder %s40, 2
      %s42 = scalar_select %p41, 0, %s40
      %s43 = ssub.s32 %s23, %s42
      %s44 = ssub.s32 %s24, %s38
      %s45 = sor.u32 %s43, %s44
      %p46 = scmp.eq.s32.totalorder %s45, 0
      %s48 = sadd.s32 %s47, 1
      %s49 = scalar_select %p46, %s47, %s48
      %p52 = pneg %p46
      %p53 = scmp.eq.s32.totalorder %s16, 7
      %p54 = por %p52, %p53
      %p55 = scmp.ne.s32.totalorder %s47, %s50
      %p56 = scmp.eq.s32.totalorder %s16, 0
      %p57 = por %p55, %p56
      %p58 = scmp.ne.s32.totalorder %s47, %s50
      %p59 = scmp.eq.s32.totalorder %s21, 7
      %p60 = por %p58, %p59
      %p61 = scmp.ne.s32.totalorder %s50, %s51
      %p62 = scmp.eq.s32.totalorder %s21, 0
      %p63 = por %p61, %p62
      %p64 = scmp.ne.s32.totalorder %s50, %s51
      %p65 = scmp.eq.s32.totalorder %s22, 7
      %p66 = por %p64, %p65
      %p68 = scmp.ne.s32.totalorder %s51, %s67
      %p69 = scmp.eq.s32.totalorder %s22, 0
      %p70 = por %p68, %p69
      %s72 = sadd.s32 %s71, 1
      %p75 = scmp.eq.s32.totalorder %s16, 7
      %p76 = scmp.ne.s32.totalorder %s71, %s73
      %p77 = scmp.eq.s32.totalorder %s16, 0
      %p78 = por %p76, %p77
      %p79 = scmp.ne.s32.totalorder %s71, %s73
      %p80 = scmp.eq.s32.totalorder %s21, 7
      %p81 = por %p79, %p80
      %p82 = scmp.ne.s32.totalorder %s73, %s74
      %p83 = scmp.eq.s32.totalorder %s21, 0
      %p84 = por %p82, %p83
      %p85 = scmp.ne.s32.totalorder %s73, %s74
      %p86 = scmp.eq.s32.totalorder %s22, 7
      %p87 = por %p85, %p86
      %p89 = scmp.ne.s32.totalorder %s74, %s88
      %p90 = scmp.eq.s32.totalorder %s22, 0
      %p91 = por %p89, %p90
      %s92 = ssub.s32 %s25, %s34
      %p93 = scmp.eq.s32.totalorder %s92, 0
      %s95 = sadd.s32 %s94, 1
      %s96 = scalar_select %p93, %s94, %s95
      %p99 = pneg %p93
      %p100 = scmp.eq.s32.totalorder %s16, 7
      %p101 = por %p99, %p100
      %p102 = scmp.ne.s32.totalorder %s94, %s97
      %p103 = scmp.eq.s32.totalorder %s16, 0
      %p104 = por %p102, %p103
      %p105 = scmp.ne.s32.totalorder %s94, %s97
      %p106 = scmp.eq.s32.totalorder %s21, 7
      %p107 = por %p105, %p106
      %p108 = scmp.ne.s32.totalorder %s97, %s98
      %p109 = scmp.eq.s32.totalorder %s21, 0
      %p110 = por %p108, %p109
      %p111 = scmp.ne.s32.totalorder %s97, %s98
      %p112 = scmp.eq.s32.totalorder %s22, 7
      %p113 = por %p111, %p112
      %p115 = scmp.ne.s32.totalorder %s98, %s114
      %p116 = scmp.eq.s32.totalorder %s22, 0
      %p117 = por %p115, %p116
      %s118 = ssub.s32 %s23, %s42
      %s119 = ssub.s32 %s24, %s38
      %s120 = sor.u32 %s118, %s119
      %p121 = scmp.eq.s32.totalorder %s120, 0
      %s123 = sadd.s32 %s122, 1
      %s124 = scalar_select %p121, %s122, %s123
      %p127 = pneg %p121
      %p128 = scmp.eq.s32.totalorder %s16, 7
      %p129 = por %p127, %p128
      %p130 = scmp.ne.s32.totalorder %s122, %s125
      %p131 = scmp.eq.s32.totalorder %s16, 0
      %p132 = por %p130, %p131
      %p133 = scmp.ne.s32.totalorder %s122, %s125
      %p134 = scmp.eq.s32.totalorder %s21, 7
      %p135 = por %p133, %p134
      %p136 = scmp.ne.s32.totalorder %s125, %s126
      %p137 = scmp.eq.s32.totalorder %s21, 0
      %p138 = por %p136, %p137
      %p139 = scmp.ne.s32.totalorder %s125, %s126
      %p140 = scmp.eq.s32.totalorder %s22, 7
      %p141 = por %p139, %p140
      %p143 = scmp.ne.s32.totalorder %s126, %s142
      %p144 = scmp.eq.s32.totalorder %s22, 0
      %p145 = por %p143, %p144
      %p146 = scmp.le.s32.totalorder 1, %s16
      %p147 = scmp.lt.s32.totalorder %s16, 9
      %p148 = pnand %p146, %p147
      %p149 = pneg %p148
      // Predicated region
      $region9: #{tpu_custom_call.1} parent=5 // pred_check
        _
      $region10: #{tpu_custom_call.1} parent=5 // pred_check_branch
        %151 = sbr.rel (%p148) target = $region12
      $region11: #{tpu_custom_call.1} parent=5 // pred_region
        %s152 = ssub.s32 %s16, 1
        // Predicated region
        $region13: #{tpu_custom_call.1} parent=11 // pred_check
          %p153 = pneg %p84
        $region14: #{tpu_custom_call.1} parent=11 // pred_check_branch
          %155 = sbr.rel (%p153) target = $region16
        $region15: #{tpu_custom_call.1} parent=11 // pred_region
          %157 = vsyncadd [#allocation7], 0
          %s158 = sshll.u32 %s1, 4
          %s159 = int_to_ptr.hbm [resolvable:$true] %s158
          %s160 = sshll.u32 [#allocation6], 4
          %s161 = int_to_ptr.vmem [resolvable:$true] %s160
          %166 = dma.hbm_to_vmem [thread:$0]  %s159, 6144, %s161, [#allocation7], 64, 64, 4
        $region16: #{tpu_custom_call.1} parent=11 // pred_fallthru
          _
      $region12: #{tpu_custom_call.1} parent=5 // pred_fallthru
        _
      %p167 = scmp.lt.s32.totalorder %s16, 8
      // Predicated region
      $region17: #{tpu_custom_call.1} parent=5 // pred_check
        %p168 = pneg %p167
      $region18: #{tpu_custom_call.1} parent=5 // pred_check_branch
        %170 = sbr.rel (%p168) target = $region20
      $region19: #{tpu_custom_call.1} parent=5 // pred_region
        // Predicated region
        $region21: #{tpu_custom_call.1} parent=19 // pred_check
          %p171 = pneg %p57
        $region22: #{tpu_custom_call.1} parent=19 // pred_check_branch
          %173 = sbr.rel (%p171) target = $region24
        $region23: #{tpu_custom_call.1} parent=19 // pred_region
          %s174 = sand.u32 %s16, 1
          %s175 = scalar_lea.sflag [#allocation4], %s174
          %s176 = sand.u32 %s47, 1
          %s177 = smul.addr %s176, 24
          %s178 = scalar_lea.vmem [#allocation3], %s177
          %180 = vsyncadd %s175, 0
          %s181 = smul.addr %s24, 3
          %s182 = smul.addr %s23, 6
          %s183 = sadd.s32 %s181, %s182
          %s184 = smul.addr %s183, 8
          %s185 = scalar_lea.hbm %s0, %s184
          %s186 = sshll.u32 %s185, 4
          %s187 = int_to_ptr.hbm [resolvable:$true] %s186
          %s188 = sshll.u32 %s178, 4
          %s189 = int_to_ptr.vmem [resolvable:$true] %s188
          %194 = dma.hbm_to_vmem [thread:$0]  %s187, 384, %s189, %s175, 128, 128, 8
        $region24: #{tpu_custom_call.1} parent=19 // pred_fallthru
          _
        // Predicated region
        $region25: #{tpu_custom_call.1} parent=19 // pred_check
          %p195 = pneg %p104
        $region26: #{tpu_custom_call.1} parent=19 // pred_check_branch
          %197 = sbr.rel (%p195) target = $region28
        $region27: #{tpu_custom_call.1} parent=19 // pred_region
          %s198 = sand.u32 %s16, 1
          %s199 = scalar_lea.sflag [#allocation4], %s198
          %s200 = sand.u32 %s94, 1
          %s201 = scalar_lea.vmem [#allocation8], %s200
          %203 = vsyncadd %s199, 0
          %s204 = scalar_lea.hbm %s2, %s25
          %s206 = sshll.u32 %s204, 4
          %s207 = int_to_ptr.hbm [resolvable:$true] %s206
          %s208 = sshll.u32 %s201, 4
          %s209 = int_to_ptr.vmem [resolvable:$true] %s208
          %211 = dma.hbm_to_vmem [thread:$0]  %s207, 16, %s209, %s199
        $region28: #{tpu_custom_call.1} parent=19 // pred_fallthru
          _
      $region20: #{tpu_custom_call.1} parent=5 // pred_fallthru
        _
      %p212 = scmp.le.s32.totalorder 1, %s16
      %p213 = scmp.lt.s32.totalorder %s16, 9
      %p214 = pnand %p212, %p213
      %p215 = pneg %p214
      // Predicated region
      $region29: #{tpu_custom_call.1} parent=5 // pred_check
        _
      $region30: #{tpu_custom_call.1} parent=5 // pred_check_branch
        %217 = sbr.rel (%p214) target = $region32
      $region31: #{tpu_custom_call.1} parent=5 // pred_region
        %s218 = ssub.s32 %s16, 1
        %s219 = sand.u32 %s21, 1
        %s220 = scalar_lea.sflag [#allocation4], %s219
        %s221 = sand.u32 %s50, 1
        %s222 = smul.addr %s221, 24
        %s223 = scalar_lea.vmem [#allocation3], %s222
        // Predicated region
        $region33: #{tpu_custom_call.1} parent=31 // pred_check
          %p224 = pneg %p63
        $region34: #{tpu_custom_call.1} parent=31 // pred_check_branch
          %226 = sbr.rel (%p224) target = $region36
        $region35: #{tpu_custom_call.1} parent=31 // pred_region
          %228 = dma.done %s220, 384
        $region36: #{tpu_custom_call.1} parent=31 // pred_fallthru
          _
        // Predicated region
        $region37: #{tpu_custom_call.1} parent=31 // pred_check
          %p229 = pneg %p84
        $region38: #{tpu_custom_call.1} parent=31 // pred_check_branch
          %231 = sbr.rel (%p229) target = $region40
        $region39: #{tpu_custom_call.1} parent=31 // pred_region
          %233 = dma.done [#allocation7], 6144
        $region40: #{tpu_custom_call.1} parent=31 // pred_fallthru
          _
        %s234 = sand.u32 %s21, 1
        %s235 = scalar_lea.sflag [#allocation4], %s234
        %s236 = sand.u32 %s97, 1
        %s237 = scalar_lea.vmem [#allocation8], %s236
        // Predicated region
        $region41: #{tpu_custom_call.1} parent=31 // pred_check
          %p238 = pneg %p110
        $region42: #{tpu_custom_call.1} parent=31 // pred_check_branch
          %240 = sbr.rel (%p238) target = $region44
        $region43: #{tpu_custom_call.1} parent=31 // pred_region
          %242 = dma.done %s235, 16
        $region44: #{tpu_custom_call.1} parent=31 // pred_fallthru
          _
        %s243 = sand.u32 %s21, 1
        %s244 = scalar_lea.sflag [#allocation4], %s243
        %s245 = sand.u32 %s50, 1
        %s246 = smul.addr %s245, 24
        %s247 = scalar_lea.vmem [#allocation3], %s246
        %p248 = pneg %p63
        %p249 = pneg %p60
        %p250 = pneg %p84
        %p251 = pneg %p81
        %s252 = sand.u32 %s21, 1
        %s253 = scalar_lea.sflag [#allocation4], %s252
        %s254 = sand.u32 %s97, 1
        %s255 = scalar_lea.vmem [#allocation8], %s254
        %p256 = pneg %p110
        %p257 = pneg %p107
        %p258 = pneg %p138
        %p259 = pneg %p135
        %s260 = sand.u32 %s125, 1
        %s261 = scalar_lea.sflag [#allocation5], %s260
        %s262 = sand.u32 %s125, 1
        %s263 = smul.addr %s262, 8
        %s264 = scalar_lea.vmem [#allocation9], %s263
        %p265 = scmp.eq.s32.totalorder %s28, 0
        // Predicated region
        $region45: #{tpu_custom_call.1} parent=31 // pred_check
          %p266 = pneg %p265
        $region46: #{tpu_custom_call.1} parent=31 // pred_check_branch
          %268 = sbr.rel (%p266) target = $region48
        $region47: #{tpu_custom_call.1} parent=31 // pred_region
          %v269 = vld [vmem:[%s223] sm:$0xff]
          %v270 = vld [vmem:[%s223 + $0x8] sm:$0xff]
          %v271 = vld [vmem:[%s223 + $0x10] sm:$0xff]
          %272 = vst [vmem:[#allocation2] sm:$0xff] %v269
          %273 = vst [vmem:[#allocation2 + $0x8] sm:$0xff] %v270
          %274 = vst [vmem:[#allocation2 + $0x10] sm:$0xff] %v271
        $region48: #{tpu_custom_call.1} parent=31 // pred_fallthru
          _
        %v275 = vld [vmem:[#allocation2] sm:$0xff]
        %v276 = vld [vmem:[#allocation2 + $0x8] sm:$0xff]
        %v277 = vld [vmem:[#allocation2 + $0x10] sm:$0xff]
        %v278 = vpack.c.bf16 %v276, %v275
        %v279 = vpack.c.bf16 %v277, %v277
        %v280 = vlaneseq
        %v281 = vshrl.u32 %v280, 7
        %v282 = vadd.s32 %v281, 8
        %v283 = vadd.s32 %v281, 16
        %s284 = smul.u32 %s28, 48
        %s285 = smul.addr %s284, 4
        %s286 = scalar_lea.vmem [#allocation6], %s285
        %v287 = vld [vmem:[%s286] sm:$0xf]
        %v288 = vld [vmem:[%s286 + $0x4] sm:$0xf]
        %v289 = vld [vmem:[%s286 + $0x8] sm:$0xf]
        %v290 = vld [vmem:[%s286 + $0xc] sm:$0xf]
        %v291 = vld [vmem:[%s286 + $0x10] sm:$0xf]
        %v292 = vld [vmem:[%s286 + $0x14] sm:$0xf]
        %v293 = vld [vmem:[%s286 + $0x18] sm:$0xf]
        %v294 = vld [vmem:[%s286 + $0x1c] sm:$0xf]
        %v295 = vld [vmem:[%s286 + $0x20] sm:$0xf]
        %v296 = vld [vmem:[%s286 + $0x24] sm:$0xf]
        %v297 = vld [vmem:[%s286 + $0x28] sm:$0xf]
        %v298 = vld [vmem:[%s286 + $0x2c] sm:$0xf]
        %v299 = vld [vmem:[%s286 + $0x30] sm:$0xf]
        %v300 = vld [vmem:[%s286 + $0x34] sm:$0xf]
        %v301 = vld [vmem:[%s286 + $0x38] sm:$0xf]
        %v302 = vld [vmem:[%s286 + $0x3c] sm:$0xf]
        %v319 = vunpack.c.l.b16 %v287
        %v320 = vunpack.c.l.b16 %v288
        %v321 = vunpack.c.l.b16 %v289
        %v322 = vunpack.c.l.b16 %v290
        %v323 = vunpack.c.l.b16 %v291
        %v324 = vunpack.c.l.b16 %v292
        %v325 = vunpack.c.l.b16 %v293
        %v326 = vunpack.c.l.b16 %v294
        %v327 = vunpack.c.l.b16 %v295
        %v328 = vunpack.c.l.b16 %v296
        %v329 = vunpack.c.l.b16 %v297
        %v330 = vunpack.c.l.b16 %v298
        %v331 = vunpack.c.l.b16 %v299
        %v332 = vunpack.c.l.b16 %v300
        %v333 = vunpack.c.l.b16 %v301
        %v334 = vunpack.c.l.b16 %v302
        %v335 = vpack.c.b16 %v320, %v319
        %v336 = vpack.c.b16 %v322, %v321
        %v337 = vpack.c.b16 %v324, %v323
        %v338 = vpack.c.b16 %v326, %v325
        %v339 = vpack.c.b16 %v328, %v327
        %v340 = vpack.c.b16 %v330, %v329
        %v341 = vpack.c.b16 %v332, %v331
        %v342 = vpack.c.b16 %v334, %v333
        %351 = vmatpush.bf16.msra.mxu0 %v342
        %352 = vmatpush.bf16.msra.mxu0 %v341
        %353 = vmatpush.bf16.msra.mxu0 %v340
        %354 = vmatpush.bf16.msra.mxu0 %v339
        %355 = vmatpush.bf16.msra.mxu0 %v338
        %356 = vmatpush.bf16.msra.mxu0 %v337
        %357 = vmatpush.bf16.msra.mxu0 %v336
        %358 = vmatpush.bf16.msra.mxu0 %v335
        %359 = vmatmul.bf16.gmra.mxu0 %v278
        %v360 = vpop.f32.mrf.mxu0
        %v361 = vadd.f32 0.0, %v360
        %v362 = vpop.f32.mrf.mxu0
        %v363 = vadd.f32 0.0, %v362
        %364 = vmatmul.bf16.gmra.mxu0 %v279
        %v365 = vpop.f32.mrf.mxu0
        %v366 = vadd.f32 0.0, %v365
        %v367 = vpop.f32.mrf.mxu0
        %368 = vdwg.mxu0
        %v369 = vrot.slane %v361, 7
        %v370 = vrot.slane %v363, 7
        %v371 = vrot.slane %v366, 7
        %vm372 = vcmp.lt.s32.totalorder %v281, 1
        %v373 = vsel %vm372, %v370, %v371
        %v374 = vsel %vm372, %v369, %v370
        %v375 = vsel %vm372, %v371, %v369
        %vm376 = vcmp.ge.s32.totalorder %v281, 1
        %vm377 = vcmp.ge.s32.totalorder %v282, 1
        %vm378 = vcmp.ge.s32.totalorder %v283, 1
        %v379 = vsel %vm376, 1, 0
        %v380 = vsel %vm377, 1, 0
        %v381 = vsel %vm378, 1, 0
        %vm382 = vcmp.eq.s32.totalorder %v379, 1
        %vm383 = vcmp.eq.s32.totalorder %v380, 1
        %vm384 = vcmp.eq.s32.totalorder %v381, 1
        %v385 = vsel %vm382, %v375, 0.0
        %v386 = vsel %vm383, %v374, 0.0
        %v387 = vsel %vm384, %v373, 0.0
        %v388 = vadd.f32 %v385, 0.0
        %v389 = vadd.f32 %v386, 0.0
        %v390 = vadd.f32 %v387, 0.0
        %s391 = sadd.s32 16, %s284
        %s392 = smul.addr %s391, 4
        %s393 = scalar_lea.vmem [#allocation6], %s392
        %v394 = vld [vmem:[%s393] sm:$0xf]
        %v395 = vld [vmem:[%s393 + $0x4] sm:$0xf]
        %v396 = vld [vmem:[%s393 + $0x8] sm:$0xf]
        %v397 = vld [vmem:[%s393 + $0xc] sm:$0xf]
        %v398 = vld [vmem:[%s393 + $0x10] sm:$0xf]
        %v399 = vld [vmem:[%s393 + $0x14] sm:$0xf]
        %v400 = vld [vmem:[%s393 + $0x18] sm:$0xf]
        %v401 = vld [vmem:[%s393 + $0x1c] sm:$0xf]
        %v402 = vld [vmem:[%s393 + $0x20] sm:$0xf]
        %v403 = vld [vmem:[%s393 + $0x24] sm:$0xf]
        %v404 = vld [vmem:[%s393 + $0x28] sm:$0xf]
        %v405 = vld [vmem:[%s393 + $0x2c] sm:$0xf]
        %v406 = vld [vmem:[%s393 + $0x30] sm:$0xf]
        %v407 = vld [vmem:[%s393 + $0x34] sm:$0xf]
        %v408 = vld [vmem:[%s393 + $0x38] sm:$0xf]
        %v409 = vld [vmem:[%s393 + $0x3c] sm:$0xf]
        %v426 = vunpack.c.l.b16 %v394
        %v427 = vunpack.c.l.b16 %v395
        %v428 = vunpack.c.l.b16 %v396
        %v429 = vunpack.c.l.b16 %v397
        %v430 = vunpack.c.l.b16 %v398
        %v431 = vunpack.c.l.b16 %v399
        %v432 = vunpack.c.l.b16 %v400
        %v433 = vunpack.c.l.b16 %v401
        %v434 = vunpack.c.l.b16 %v402
        %v435 = vunpack.c.l.b16 %v403
        %v436 = vunpack.c.l.b16 %v404
        %v437 = vunpack.c.l.b16 %v405
        %v438 = vunpack.c.l.b16 %v406
        %v439 = vunpack.c.l.b16 %v407
        %v440 = vunpack.c.l.b16 %v408
        %v441 = vunpack.c.l.b16 %v409
        %v442 = vpack.c.b16 %v427, %v426
        %v443 = vpack.c.b16 %v429, %v428
        %v444 = vpack.c.b16 %v431, %v430
        %v445 = vpack.c.b16 %v433, %v432
        %v446 = vpack.c.b16 %v435, %v434
        %v447 = vpack.c.b16 %v437, %v436
        %v448 = vpack.c.b16 %v439, %v438
        %v449 = vpack.c.b16 %v441, %v440
        %458 = vmatpush.bf16.msra.mxu0 %v449
        %459 = vmatpush.bf16.msra.mxu0 %v448
        %460 = vmatpush.bf16.msra.mxu0 %v447
        %461 = vmatpush.bf16.msra.mxu0 %v446
        %462 = vmatpush.bf16.msra.mxu0 %v445
        %463 = vmatpush.bf16.msra.mxu0 %v444
        %464 = vmatpush.bf16.msra.mxu0 %v443
        %465 = vmatpush.bf16.msra.mxu0 %v442
        %466 = vmatmul.bf16.gmra.mxu0 %v278
        %v467 = vpop.f32.mrf.mxu0
        %v468 = vadd.f32 0.0, %v467
        %v469 = vpop.f32.mrf.mxu0
        %v470 = vadd.f32 0.0, %v469
        %471 = vmatmul.bf16.gmra.mxu0 %v279
        %v472 = vpop.f32.mrf.mxu0
        %v473 = vadd.f32 0.0, %v472
        %v474 = vpop.f32.mrf.mxu0
        %475 = vdwg.mxu0
        %v476 = vadd.f32 %v388, %v468
        %v477 = vadd.f32 %v389, %v470
        %v478 = vadd.f32 %v390, %v473
        %s479 = sadd.s32 32, %s284
        %s480 = smul.addr %s479, 4
        %s481 = scalar_lea.vmem [#allocation6], %s480
        %v482 = vld [vmem:[%s481] sm:$0xf]
        %v483 = vld [vmem:[%s481 + $0x4] sm:$0xf]
        %v484 = vld [vmem:[%s481 + $0x8] sm:$0xf]
        %v485 = vld [vmem:[%s481 + $0xc] sm:$0xf]
        %v486 = vld [vmem:[%s481 + $0x10] sm:$0xf]
        %v487 = vld [vmem:[%s481 + $0x14] sm:$0xf]
        %v488 = vld [vmem:[%s481 + $0x18] sm:$0xf]
        %v489 = vld [vmem:[%s481 + $0x1c] sm:$0xf]
        %v490 = vld [vmem:[%s481 + $0x20] sm:$0xf]
        %v491 = vld [vmem:[%s481 + $0x24] sm:$0xf]
        %v492 = vld [vmem:[%s481 + $0x28] sm:$0xf]
        %v493 = vld [vmem:[%s481 + $0x2c] sm:$0xf]
        %v494 = vld [vmem:[%s481 + $0x30] sm:$0xf]
        %v495 = vld [vmem:[%s481 + $0x34] sm:$0xf]
        %v496 = vld [vmem:[%s481 + $0x38] sm:$0xf]
        %v497 = vld [vmem:[%s481 + $0x3c] sm:$0xf]
        %v514 = vunpack.c.l.b16 %v482
        %v515 = vunpack.c.l.b16 %v483
        %v516 = vunpack.c.l.b16 %v484
        %v517 = vunpack.c.l.b16 %v485
        %v518 = vunpack.c.l.b16 %v486
        %v519 = vunpack.c.l.b16 %v487
        %v520 = vunpack.c.l.b16 %v488
        %v521 = vunpack.c.l.b16 %v489
        %v522 = vunpack.c.l.b16 %v490
        %v523 = vunpack.c.l.b16 %v491
        %v524 = vunpack.c.l.b16 %v492
        %v525 = vunpack.c.l.b16 %v493
        %v526 = vunpack.c.l.b16 %v494
        %v527 = vunpack.c.l.b16 %v495
        %v528 = vunpack.c.l.b16 %v496
        %v529 = vunpack.c.l.b16 %v497
        %v530 = vpack.c.b16 %v515, %v514
        %v531 = vpack.c.b16 %v517, %v516
        %v532 = vpack.c.b16 %v519, %v518
        %v533 = vpack.c.b16 %v521, %v520
        %v534 = vpack.c.b16 %v523, %v522
        %v535 = vpack.c.b16 %v525, %v524
        %v536 = vpack.c.b16 %v527, %v526
        %v537 = vpack.c.b16 %v529, %v528
        %546 = vmatpush.bf16.msra.mxu0 %v537
        %547 = vmatpush.bf16.msra.mxu0 %v536
        %548 = vmatpush.bf16.msra.mxu0 %v535
        %549 = vmatpush.bf16.msra.mxu0 %v534
        %550 = vmatpush.bf16.msra.mxu0 %v533
        %551 = vmatpush.bf16.msra.mxu0 %v532
        %552 = vmatpush.bf16.msra.mxu0 %v531
        %553 = vmatpush.bf16.msra.mxu0 %v530
        %554 = vmatmul.bf16.gmra.mxu0 %v278
        %v555 = vpop.f32.mrf.mxu0
        %v556 = vadd.f32 0.0, %v555
        %v557 = vpop.f32.mrf.mxu0
        %v558 = vadd.f32 0.0, %v557
        %559 = vmatmul.bf16.gmra.mxu0 %v279
        %v560 = vpop.f32.mrf.mxu0
        %v561 = vadd.f32 0.0, %v560
        %v562 = vpop.f32.mrf.mxu0
        %563 = vdwg.mxu0
        %v564 = vrot.slane %v556, 1
        %v565 = vrot.slane %v558, 1
        %v566 = vrot.slane %v561, 1
        %vm567 = vcmp.lt.s32.totalorder %v281, 7
        %v568 = vsel %vm567, %v565, %v566
        %v569 = vsel %vm567, %v564, %v565
        %v570 = vsel %vm567, %v566, %v564
        %vm571 = vcmp.lt.s32.totalorder %v281, 23
        %vm572 = vcmp.lt.s32.totalorder %v282, 23
        %vm573 = vcmp.lt.s32.totalorder %v283, 23
        %v574 = vsel %vm571, 1, 0
        %v575 = vsel %vm572, 1, 0
        %v576 = vsel %vm573, 1, 0
        %vm577 = vcmp.eq.s32.totalorder %v574, 1
        %vm578 = vcmp.eq.s32.totalorder %v575, 1
        %vm579 = vcmp.eq.s32.totalorder %v576, 1
        %v580 = vsel %vm577, %v569, 0.0
        %v581 = vsel %vm578, %v568, 0.0
        %v582 = vsel %vm579, %v570, 0.0
        %v583 = vadd.f32 %v476, %v580
        %v584 = vadd.f32 %v477, %v581
        %v585 = vadd.f32 %v478, %v582
        %v586 = vadd.f32 %v275, %v583
        %v587 = vadd.f32 %v276, %v584
        %v588 = vadd.f32 %v277, %v585
        %v589 = vld [vmem:[%s237] sm:$0x1]
        %v591 = vperm.slane %v589, 0
        %v593 = vadd.f32 %v586, %v591
        %v594 = vadd.f32 %v587, %v591
        %v595 = vadd.f32 %v588, %v591
        %v596 = vmax.f32 %v593, 0.0
        %v597 = vmax.f32 %v594, 0.0
        %v598 = vmax.f32 %v595, 0.0
        %s599 = smul.u32 %s27, 8
        %s600 = ssub.s32 %s599, 8
        %v601 = vstv %s600
        %v602 = vadd.s32 %v601, %v281
        %v603 = vadd.s32 %v601, %v282
        %v604 = vadd.s32 %v601, %v283
        %vm605 = vcmp.ge.s32.totalorder %v602, 0
        %vm606 = vcmp.ge.s32.totalorder %v603, 0
        %vm607 = vcmp.ge.s32.totalorder %v604, 0
        %vm608 = vcmp.lt.s32.totalorder %v602, 16
        %vm609 = vcmp.lt.s32.totalorder %v603, 16
        %vm610 = vcmp.lt.s32.totalorder %v604, 16
        %vm611 = vmand %vm605, %vm608
        %vm612 = vmand %vm606, %vm609
        %vm613 = vmand %vm607, %vm610
        %v614 = vsel %vm611, 1, 0
        %v615 = vsel %vm612, 1, 0
        %v616 = vsel %vm613, 1, 0
        %vm617 = vcmp.eq.s32.totalorder %v614, 1
        %vm618 = vcmp.eq.s32.totalorder %v615, 1
        %vm619 = vcmp.eq.s32.totalorder %v616, 1
        %v620 = vsel %vm617, %v596, 0.0
        %v621 = vsel %vm618, %v597, 0.0
        %v622 = vsel %vm619, %v598, 0.0
        %623 = vst [vmem:[#allocation2] sm:$0xff] %v620
        %624 = vst [vmem:[#allocation2 + $0x8] sm:$0xff] %v621
        %625 = vst [vmem:[#allocation2 + $0x10] sm:$0xff] %v622
        %p626 = scmp.eq.s32.totalorder %s28, 1
        // Predicated region
        $region49: #{tpu_custom_call.1} parent=31 // pred_check
          %p627 = pneg %p626
        $region50: #{tpu_custom_call.1} parent=31 // pred_check_branch
          %629 = sbr.rel (%p627) target = $region52
        $region51: #{tpu_custom_call.1} parent=31 // pred_region
          %630 = vst [vmem:[%s264] sm:$0xff] %v621
        $region52: #{tpu_custom_call.1} parent=31 // pred_fallthru
          _
        %s631 = sand.u32 %s125, 1
        %s632 = scalar_lea.sflag [#allocation5], %s631
        %s633 = sand.u32 %s125, 1
        %s634 = smul.addr %s633, 8
        %s635 = scalar_lea.vmem [#allocation9], %s634
        // Predicated region
        $region53: #{tpu_custom_call.1} parent=31 // pred_check
          %p636 = pneg %p135
        $region54: #{tpu_custom_call.1} parent=31 // pred_check_branch
          %638 = sbr.rel (%p636) target = $region56
        $region55: #{tpu_custom_call.1} parent=31 // pred_region
          %640 = vsyncadd %s632, 0
          %s641 = smul.addr %s26, 2
          %s642 = sadd.s32 %s27, %s641
          %s643 = smul.addr %s642, 8
          %s644 = scalar_lea.hbm %s3, %s643
          %s646 = sshll.u32 %s635, 4
          %s647 = int_to_ptr.vmem [resolvable:$true] %s646
          %s648 = sshll.u32 %s644, 4
          %s649 = int_to_ptr.hbm [resolvable:$true] %s648
          %651 = dma.vmem_to_hbm [thread:$0]  %s647, 128, %s649, %s632
        $region56: #{tpu_custom_call.1} parent=31 // pred_fallthru
          _
      $region32: #{tpu_custom_call.1} parent=5 // pred_fallthru
        _
      %p652 = scmp.le.s32.totalorder 2, %s16
      // Predicated region
      $region57: #{tpu_custom_call.1} parent=5 // pred_check
        %p653 = pneg %p652
      $region58: #{tpu_custom_call.1} parent=5 // pred_check_branch
        %655 = sbr.rel (%p653) target = $region60
      $region59: #{tpu_custom_call.1} parent=5 // pred_region
        %s656 = ssub.s32 %s16, 2
        // Predicated region
        $region61: #{tpu_custom_call.1} parent=59 // pred_check
          %p657 = pneg %p141
        $region62: #{tpu_custom_call.1} parent=59 // pred_check_branch
          %659 = sbr.rel (%p657) target = $region64
        $region63: #{tpu_custom_call.1} parent=59 // pred_region
          %s660 = sand.u32 %s126, 1
          %s661 = scalar_lea.sflag [#allocation5], %s660
          %s662 = sand.u32 %s126, 1
          %s663 = smul.addr %s662, 8
          %s664 = scalar_lea.vmem [#allocation9], %s663
          %666 = dma.done %s661, 128
        $region64: #{tpu_custom_call.1} parent=59 // pred_fallthru
          _
      $region60: #{tpu_custom_call.1} parent=5 // pred_fallthru
        _
    $region6: #{tpu_custom_call.1} parent=1 // loop_footer
      %s20 = sadd.s32 1, %s16
    $region7: #{tpu_custom_call.1} parent=1 // loop_footer_branch
      %15 = sbr.rel target = $region3
    $region8: #{tpu_custom_call.1} parent=1 // loop_exit
      _
    %667 = vsyncpa [#allocation4], 1
    %s668 = scalar_lea.sflag [#allocation4], 1
    %669 = vsyncpa %s668, 1
    %670 = vsyncpa [#allocation7], 1
    %671 = vsyncpa [#allocation5], 1
    %s672 = scalar_lea.sflag [#allocation5], 1
    %673 = vsyncpa %s672, 1

</llo_original>
